<compile_context>
chip_gen: v6e
topology: v6e:2x2x1
jax: 0.10.0
libtpu: 0.0.40
codegen_flags: <defaults>
</compile_context>

<pallas_src>
import functools

import jax
import jax.numpy as jnp
from jax.experimental import pallas as pl
from jax.experimental.pallas import tpu as pltpu

Z_DIM = 8
IN_DIM = 48


def _ae_kernel(
    x_ref, eps_ref,
    we1_ref, we2_ref, wh_ref,        # encoder L1, encoder L2, fused mu|logvar head
    wd1_ref, wd2_ref, wd3_ref,       # decoder L1, L2, L3
    b_ref,                            # packed biases (1, 160) f32
    out_ref,                          # packed outputs (TB, 128) f32
    *, z_dim,
):
    f32 = jnp.float32
    bf16 = jnp.bfloat16

    # ---- unpack biases (static slices) ----
    b = b_ref[...]
    off = 0
    def take(n):
        nonlocal off
        s = b[:, off:off + n]
        off += n
        return s
    be1 = take(32)
    be2 = take(16)
    bh = take(2 * z_dim)
    bd1 = take(16)
    bd2 = take(32)
    bd3 = take(IN_DIM)

    x = x_ref[...]

    # ---- encoder ----
    h = jnp.dot(x.astype(bf16), we1_ref[...], preferred_element_type=f32) + be1
    h = jnp.maximum(h, 0.0)
    h = jnp.dot(h.astype(bf16), we2_ref[...], preferred_element_type=f32) + be2

    # ---- fused probabilistic heads + reparameterization ----
    hm = jnp.dot(h.astype(bf16), wh_ref[...], preferred_element_type=f32) + bh
    mu = hm[:, :z_dim]
    logvar = hm[:, z_dim:]
    std = jnp.exp(0.5 * logvar)
    z = mu + eps_ref[...] * std

    # ---- decoder ----
    d = jnp.dot(z.astype(bf16), wd1_ref[...], preferred_element_type=f32) + bd1
    d = jnp.maximum(d, 0.0)
    d = jnp.dot(d.astype(bf16), wd2_ref[...], preferred_element_type=f32) + bd2
    d = jnp.maximum(d, 0.0)
    x_recon = jnp.dot(d.astype(bf16), wd3_ref[...], preferred_element_type=f32) + bd3

    # ---- single lane-dense full-width store of the packed output slab ----
    pad_w = out_ref.shape[-1] - (IN_DIM + 3 * z_dim)
    pad = jnp.zeros((x.shape[0], pad_w), f32)
    out_ref[...] = jnp.concatenate([x_recon, z, mu, logvar, pad], axis=-1)


def init_params(key, z_dim=Z_DIM):
    """PyTorch nn.Linear-style uniform init, repacked for the kernel:
    weights pre-transposed to (in, out) and stored bf16; mu/logvar head fused;
    all biases concatenated into one (1, 160) f32 slab."""
    layer_dims = [
        ("e1", IN_DIM, 32), ("e2", 32, 16),
        ("mu", 16, z_dim), ("lv", 16, z_dim),
        ("d1", z_dim, 16), ("d2", 16, 32), ("d3", 32, IN_DIM),
    ]
    raw = {}
    for name, fan_in, fan_out in layer_dims:
        key, kw, kb = jax.random.split(key, 3)
        bound = 1.0 / jnp.sqrt(float(fan_in))
        raw["w" + name] = jax.random.uniform(
            kw, (fan_in, fan_out), jnp.float32, -bound, bound)
        raw["b" + name] = jax.random.uniform(
            kb, (1, fan_out), jnp.float32, -bound, bound)

    return {
        "we1": raw["we1"].astype(jnp.bfloat16),
        "we2": raw["we2"].astype(jnp.bfloat16),
        "wh": jnp.concatenate([raw["wmu"], raw["wlv"]], axis=1).astype(jnp.bfloat16),
        "wd1": raw["wd1"].astype(jnp.bfloat16),
        "wd2": raw["wd2"].astype(jnp.bfloat16),
        "wd3": raw["wd3"].astype(jnp.bfloat16),
        "bias": jnp.concatenate(
            [raw["be1"], raw["be2"], raw["bmu"], raw["blv"],
             raw["bd1"], raw["bd2"], raw["bd3"]], axis=1).astype(jnp.float32),
    }


def _round_up(n, m):
    return ((n + m - 1) // m) * m


def ae_word_breakfast_mlp(x, eps, params, *, tb=1024):
    """Pallas forward pass. x: (B, 48) f32, eps: (B, z_dim) standard normal."""
    B = x.shape[0]
    z_dim = eps.shape[1]

    # Batch tile: multiple of 8 (f32 sublane); cap so VMEM stays tiny even on
    # v7x (TB=1024 -> a few MB including double buffering).
    TB = min(tb, _round_up(B, 8))
    B_pad = _round_up(B, TB)
    if B_pad != B:
        x = jnp.pad(x, ((0, B_pad - B), (0, 0)))
        eps = jnp.pad(eps, ((0, B_pad - B), (0, 0)))

    out_lanes = max(128, _round_up(IN_DIM + 3 * z_dim, 128))
    grid = (B_pad // TB,)

    def pinned(a):
        # weights / bias stay resident across all grid steps
        return pl.BlockSpec(a.shape, lambda i: (0, 0))

    kernel = functools.partial(_ae_kernel, z_dim=z_dim)

    out = pl.pallas_call(
        kernel,
        out_shape=jax.ShapeDtypeStruct((B_pad, out_lanes), jnp.float32),
        grid=grid,
        in_specs=[
            pl.BlockSpec((TB, x.shape[1]), lambda i: (i, 0)),
            pl.BlockSpec((TB, z_dim), lambda i: (i, 0)),
            pinned(params["we1"]), pinned(params["we2"]), pinned(params["wh"]),
            pinned(params["wd1"]), pinned(params["wd2"]), pinned(params["wd3"]),
            pinned(params["bias"]),
        ],
        out_specs=pl.BlockSpec((TB, out_lanes), lambda i: (i, 0)),
        compiler_params=pltpu.CompilerParams(
            dimension_semantics=("parallel",)),
    )(x, eps,
      params["we1"], params["we2"], params["wh"],
      params["wd1"], params["wd2"], params["wd3"],
      params["bias"])

    x_recon = out[:B, :IN_DIM]
    z = out[:B, IN_DIM:IN_DIM + z_dim]
    mu = out[:B, IN_DIM + z_dim:IN_DIM + 2 * z_dim]
    logvar = out[:B, IN_DIM + 2 * z_dim:IN_DIM + 3 * z_dim]
    return x_recon, z, mu, logvar


def _reference(x, eps, params, z_dim=Z_DIM):
    """Pure-JAX reference with the same bf16-input / f32-accumulate matmuls."""
    f32 = jnp.float32
    bf16 = jnp.bfloat16
    b = params["bias"]
    off = 0
    def take(n):
        nonlocal off
        s = b[:, off:off + n]
        off += n
        return s
    be1, be2, bh = take(32), take(16), take(2 * z_dim)
    bd1, bd2, bd3 = take(16), take(32), take(IN_DIM)

    dot = lambda a, w: jnp.dot(a.astype(bf16), w, preferred_element_type=f32)
    h = jnp.maximum(dot(x, params["we1"]) + be1, 0.0)
    h = dot(h, params["we2"]) + be2
    hm = dot(h, params["wh"]) + bh
    mu, logvar = hm[:, :z_dim], hm[:, z_dim:]
    z = mu + eps * jnp.exp(0.5 * logvar)
    d = jnp.maximum(dot(z, params["wd1"]) + bd1, 0.0)
    d = jnp.maximum(dot(d, params["wd2"]) + bd2, 0.0)
    x_recon = dot(d, params["wd3"]) + bd3
    return x_recon, z, mu, logvar


if __name__ == "__main__":
    key = jax.random.PRNGKey(0)
    k_param, k_x, k_eps = jax.random.split(key, 3)

    B = 8
    params = init_params(k_param, Z_DIM)
    x = jax.random.normal(k_x, (B, IN_DIM), jnp.float32)
    # eps plays the role of torch.randn_like(std) in reparameterize; drawn
    # deterministically outside the kernel so the result is reproducible.
    eps = jax.random.normal(k_eps, (B, Z_DIM), jnp.float32)

    outs = ae_word_breakfast_mlp(x, eps, params)
    outs = jax.block_until_ready(outs)

    refs = _reference(x, eps, params, Z_DIM)
    for o, r in zip(outs, refs):
        assert o.shape == r.shape
        err = jnp.max(jnp.abs(o - r))
        assert err < 1e-3, err

    print("KERNEL_OK")
</pallas_src>

<mosaic_0001>
module attributes {stable_mosaic.version = 11 : i64} {
  func.func @_ae_kernel(%arg0: i32, %arg1: memref<8x48xf32, #tpu.memory_space<vmem>>, %arg2: memref<8x8xf32, #tpu.memory_space<vmem>>, %arg3: memref<48x32xbf16, #tpu.memory_space<vmem>>, %arg4: memref<32x16xbf16, #tpu.memory_space<vmem>>, %arg5: memref<16x16xbf16, #tpu.memory_space<vmem>>, %arg6: memref<8x16xbf16, #tpu.memory_space<vmem>>, %arg7: memref<16x32xbf16, #tpu.memory_space<vmem>>, %arg8: memref<32x48xbf16, #tpu.memory_space<vmem>>, %arg9: memref<1x160xf32, #tpu.memory_space<vmem>>, %arg10: memref<8x128xf32, #tpu.memory_space<vmem>>) attributes {dimension_semantics = [#tpu.dimension_semantics<parallel>], iteration_bounds = array<i64: 1>, scalar_prefetch = 0 : i64, scratch_operands = 0 : i64, tpu.core_type = #tpu.core_type<tc>, window_params = [{transform_indices = @transform_0, window_bounds = array<i64: 8, 48>}, {transform_indices = @transform_1, window_bounds = array<i64: 8, 8>}, {pipeline_mode = #tpu.pipeline_mode<synchronous>, transform_indices = @transform_2, window_bounds = array<i64: 48, 32>}, {pipeline_mode = #tpu.pipeline_mode<synchronous>, transform_indices = @transform_3, window_bounds = array<i64: 32, 16>}, {pipeline_mode = #tpu.pipeline_mode<synchronous>, transform_indices = @transform_4, window_bounds = array<i64: 16, 16>}, {pipeline_mode = #tpu.pipeline_mode<synchronous>, transform_indices = @transform_5, window_bounds = array<i64: 8, 16>}, {pipeline_mode = #tpu.pipeline_mode<synchronous>, transform_indices = @transform_6, window_bounds = array<i64: 16, 32>}, {pipeline_mode = #tpu.pipeline_mode<synchronous>, transform_indices = @transform_7, window_bounds = array<i64: 32, 48>}, {pipeline_mode = #tpu.pipeline_mode<synchronous>, transform_indices = @transform_8, window_bounds = array<i64: 1, 160>}, {transform_indices = @transform_9, window_bounds = array<i64: 8, 128>}]} {
    %c0 = arith.constant 0 : index
    %c0_0 = arith.constant 0 : index
    %0 = vector.load %arg9[%c0, %c0_0] : memref<1x160xf32, #tpu.memory_space<vmem>>, vector<1x160xf32>
    %1 = vector.extract_strided_slice %0 {offsets = [0, 0], sizes = [1, 32], strides = [1, 1]} : vector<1x160xf32> to vector<1x32xf32>
    %2 = vector.extract_strided_slice %0 {offsets = [0, 32], sizes = [1, 16], strides = [1, 1]} : vector<1x160xf32> to vector<1x16xf32>
    %3 = vector.extract_strided_slice %0 {offsets = [0, 48], sizes = [1, 16], strides = [1, 1]} : vector<1x160xf32> to vector<1x16xf32>
    %4 = vector.extract_strided_slice %0 {offsets = [0, 64], sizes = [1, 16], strides = [1, 1]} : vector<1x160xf32> to vector<1x16xf32>
    %5 = vector.extract_strided_slice %0 {offsets = [0, 80], sizes = [1, 32], strides = [1, 1]} : vector<1x160xf32> to vector<1x32xf32>
    %6 = vector.extract_strided_slice %0 {offsets = [0, 112], sizes = [1, 48], strides = [1, 1]} : vector<1x160xf32> to vector<1x48xf32>
    %c0_1 = arith.constant 0 : index
    %c0_2 = arith.constant 0 : index
    %7 = vector.load %arg1[%c0_1, %c0_2] : memref<8x48xf32, #tpu.memory_space<vmem>>, vector<8x48xf32>
    %8 = arith.truncf %7 : vector<8x48xf32> to vector<8x48xbf16>
    %c0_3 = arith.constant 0 : index
    %c0_4 = arith.constant 0 : index
    %9 = vector.load %arg3[%c0_3, %c0_4] : memref<48x32xbf16, #tpu.memory_space<vmem>>, vector<48x32xbf16>
    %cst = arith.constant dense<0.000000e+00> : vector<8x32xf32>
    %10 = tpu.matmul %8, %9, %cst {dimension_numbers = #tpu.dot_dimension_numbers<[1], [0], [0], [1], [0, 0, 1, 1], [], []>} : vector<8x48xbf16>, vector<48x32xbf16>, vector<8x32xf32> -> vector<8x32xf32>
    %11 = vector.broadcast %1 : vector<1x32xf32> to vector<8x32xf32>
    %12 = arith.addf %10, %11 : vector<8x32xf32>
    %cst_5 = arith.constant 0.000000e+00 : f32
    %13 = vector.broadcast %cst_5 : f32 to vector<8x32xf32>
    %14 = arith.maximumf %12, %13 : vector<8x32xf32>
    %15 = arith.truncf %14 : vector<8x32xf32> to vector<8x32xbf16>
    %c0_6 = arith.constant 0 : index
    %c0_7 = arith.constant 0 : index
    %16 = vector.load %arg4[%c0_6, %c0_7] : memref<32x16xbf16, #tpu.memory_space<vmem>>, vector<32x16xbf16>
    %cst_8 = arith.constant dense<0.000000e+00> : vector<8x16xf32>
    %17 = tpu.matmul %15, %16, %cst_8 {dimension_numbers = #tpu.dot_dimension_numbers<[1], [0], [0], [1], [0, 0, 1, 1], [], []>} : vector<8x32xbf16>, vector<32x16xbf16>, vector<8x16xf32> -> vector<8x16xf32>
    %18 = vector.broadcast %2 : vector<1x16xf32> to vector<8x16xf32>
    %19 = arith.addf %17, %18 : vector<8x16xf32>
    %20 = arith.truncf %19 : vector<8x16xf32> to vector<8x16xbf16>
    %c0_9 = arith.constant 0 : index
    %c0_10 = arith.constant 0 : index
    %21 = vector.load %arg5[%c0_9, %c0_10] : memref<16x16xbf16, #tpu.memory_space<vmem>>, vector<16x16xbf16>
    %cst_11 = arith.constant dense<0.000000e+00> : vector<8x16xf32>
    %22 = tpu.matmul %20, %21, %cst_11 {dimension_numbers = #tpu.dot_dimension_numbers<[1], [0], [0], [1], [0, 0, 1, 1], [], []>} : vector<8x16xbf16>, vector<16x16xbf16>, vector<8x16xf32> -> vector<8x16xf32>
    %23 = vector.broadcast %3 : vector<1x16xf32> to vector<8x16xf32>
    %24 = arith.addf %22, %23 : vector<8x16xf32>
    %25 = vector.extract_strided_slice %24 {offsets = [0, 0], sizes = [8, 8], strides = [1, 1]} : vector<8x16xf32> to vector<8x8xf32>
    %26 = vector.extract_strided_slice %24 {offsets = [0, 8], sizes = [8, 8], strides = [1, 1]} : vector<8x16xf32> to vector<8x8xf32>
    %cst_12 = arith.constant 5.000000e-01 : f32
    %27 = vector.broadcast %cst_12 : f32 to vector<8x8xf32>
    %28 = arith.mulf %27, %26 : vector<8x8xf32>
    %29 = math.exp %28 : vector<8x8xf32>
    %c0_13 = arith.constant 0 : index
    %c0_14 = arith.constant 0 : index
    %30 = vector.load %arg2[%c0_13, %c0_14] : memref<8x8xf32, #tpu.memory_space<vmem>>, vector<8x8xf32>
    %31 = arith.mulf %30, %29 : vector<8x8xf32>
    %32 = arith.addf %25, %31 : vector<8x8xf32>
    %33 = arith.truncf %32 : vector<8x8xf32> to vector<8x8xbf16>
    %c0_15 = arith.constant 0 : index
    %c0_16 = arith.constant 0 : index
    %34 = vector.load %arg6[%c0_15, %c0_16] : memref<8x16xbf16, #tpu.memory_space<vmem>>, vector<8x16xbf16>
    %cst_17 = arith.constant dense<0.000000e+00> : vector<8x16xf32>
    %35 = tpu.matmul %33, %34, %cst_17 {dimension_numbers = #tpu.dot_dimension_numbers<[1], [0], [0], [1], [0, 0, 1, 1], [], []>} : vector<8x8xbf16>, vector<8x16xbf16>, vector<8x16xf32> -> vector<8x16xf32>
    %36 = vector.broadcast %4 : vector<1x16xf32> to vector<8x16xf32>
    %37 = arith.addf %35, %36 : vector<8x16xf32>
    %cst_18 = arith.constant 0.000000e+00 : f32
    %38 = vector.broadcast %cst_18 : f32 to vector<8x16xf32>
    %39 = arith.maximumf %37, %38 : vector<8x16xf32>
    %40 = arith.truncf %39 : vector<8x16xf32> to vector<8x16xbf16>
    %c0_19 = arith.constant 0 : index
    %c0_20 = arith.constant 0 : index
    %41 = vector.load %arg7[%c0_19, %c0_20] : memref<16x32xbf16, #tpu.memory_space<vmem>>, vector<16x32xbf16>
    %cst_21 = arith.constant dense<0.000000e+00> : vector<8x32xf32>
    %42 = tpu.matmul %40, %41, %cst_21 {dimension_numbers = #tpu.dot_dimension_numbers<[1], [0], [0], [1], [0, 0, 1, 1], [], []>} : vector<8x16xbf16>, vector<16x32xbf16>, vector<8x32xf32> -> vector<8x32xf32>
    %43 = vector.broadcast %5 : vector<1x32xf32> to vector<8x32xf32>
    %44 = arith.addf %42, %43 : vector<8x32xf32>
    %cst_22 = arith.constant 0.000000e+00 : f32
    %45 = vector.broadcast %cst_22 : f32 to vector<8x32xf32>
    %46 = arith.maximumf %44, %45 : vector<8x32xf32>
    %47 = arith.truncf %46 : vector<8x32xf32> to vector<8x32xbf16>
    %c0_23 = arith.constant 0 : index
    %c0_24 = arith.constant 0 : index
    %48 = vector.load %arg8[%c0_23, %c0_24] : memref<32x48xbf16, #tpu.memory_space<vmem>>, vector<32x48xbf16>
    %cst_25 = arith.constant dense<0.000000e+00> : vector<8x48xf32>
    %49 = tpu.matmul %47, %48, %cst_25 {dimension_numbers = #tpu.dot_dimension_numbers<[1], [0], [0], [1], [0, 0, 1, 1], [], []>} : vector<8x32xbf16>, vector<32x48xbf16>, vector<8x48xf32> -> vector<8x48xf32>
    %50 = vector.broadcast %6 : vector<1x48xf32> to vector<8x48xf32>
    %51 = arith.addf %49, %50 : vector<8x48xf32>
    %cst_26 = arith.constant 0.000000e+00 : f32
    %52 = vector.broadcast %cst_26 : f32 to vector<8x56xf32>
    %53 = tpu.concatenate %51, %32, %25, %26, %52 in 1 : vector<8x48xf32>, vector<8x8xf32>, vector<8x8xf32>, vector<8x8xf32>, vector<8x56xf32> -> vector<8x128xf32>
    %c0_27 = arith.constant 0 : index
    %c0_28 = arith.constant 0 : index
    %54 = vector.load %arg10[%c0_27, %c0_28] : memref<8x128xf32, #tpu.memory_space<vmem>>, vector<8x128xf32>
    tpu.vector_store %arg10[%c0_27, %c0_28], %53 {strides = array<i32>} : memref<8x128xf32, #tpu.memory_space<vmem>>, vector<8x128xf32>,
    return
  }
  func.func @transform_0(%arg0: i32) -> (i32, i32) {
    %c0_i32 = arith.constant 0 : i32
    %c0_i32_0 = arith.constant 0 : i32
    return %arg0, %c0_i32 : i32, i32
  }
  func.func @transform_1(%arg0: i32) -> (i32, i32) {
    %c0_i32 = arith.constant 0 : i32
    %c0_i32_0 = arith.constant 0 : i32
    return %arg0, %c0_i32 : i32, i32
  }
  func.func @transform_2(%arg0: i32) -> (i32, i32) {
    %c0_i32 = arith.constant 0 : i32
    %c0_i32_0 = arith.constant 0 : i32
    %c0_i32_1 = arith.constant 0 : i32
    return %c0_i32, %c0_i32_0 : i32, i32
  }
  func.func @transform_3(%arg0: i32) -> (i32, i32) {
    %c0_i32 = arith.constant 0 : i32
    %c0_i32_0 = arith.constant 0 : i32
    %c0_i32_1 = arith.constant 0 : i32
    return %c0_i32, %c0_i32_0 : i32, i32
  }
  func.func @transform_4(%arg0: i32) -> (i32, i32) {
    %c0_i32 = arith.constant 0 : i32
    %c0_i32_0 = arith.constant 0 : i32
    %c0_i32_1 = arith.constant 0 : i32
    return %c0_i32, %c0_i32_0 : i32, i32
  }
  func.func @transform_5(%arg0: i32) -> (i32, i32) {
    %c0_i32 = arith.constant 0 : i32
    %c0_i32_0 = arith.constant 0 : i32
    %c0_i32_1 = arith.constant 0 : i32
    return %c0_i32, %c0_i32_0 : i32, i32
  }
  func.func @transform_6(%arg0: i32) -> (i32, i32) {
    %c0_i32 = arith.constant 0 : i32
    %c0_i32_0 = arith.constant 0 : i32
    %c0_i32_1 = arith.constant 0 : i32
    return %c0_i32, %c0_i32_0 : i32, i32
  }
  func.func @transform_7(%arg0: i32) -> (i32, i32) {
    %c0_i32 = arith.constant 0 : i32
    %c0_i32_0 = arith.constant 0 : i32
    %c0_i32_1 = arith.constant 0 : i32
    return %c0_i32, %c0_i32_0 : i32, i32
  }
  func.func @transform_8(%arg0: i32) -> (i32, i32) {
    %c0_i32 = arith.constant 0 : i32
    %c0_i32_0 = arith.constant 0 : i32
    %c0_i32_1 = arith.constant 0 : i32
    return %c0_i32, %c0_i32_0 : i32, i32
  }
  func.func @transform_9(%arg0: i32) -> (i32, i32) {
    %c0_i32 = arith.constant 0 : i32
    %c0_i32_0 = arith.constant 0 : i32
    return %arg0, %c0_i32 : i32, i32
  }
}

</mosaic_0001>

<llo_original>
// kernel: tpu_custom_call.1
$region0: #{tpu_custom_call.1}
  #allocation0 [shape = 'u32[]', space=smem, size = 0x4, offset = 0x4, fixed_abs, tag = 'smem constant byte address 0x4 - core index']
  #allocation1 [shape = 'u32[144,128]{1,0:T(1,128)}', space=vmem, size = 0x12000, scoped, tag = 'internal scratch']
  %s0 = inlined_call_operand.vmem [shape: f32[8,48], index: 0, kind: input, shape index: {}]
  %s1 = inlined_call_operand.vmem [shape: f32[8,8], index: 1, kind: input, shape index: {}]
  %s2 = inlined_call_operand.vmem [shape: bf16[48,32], index: 2, kind: input, shape index: {}]
  %s3 = inlined_call_operand.vmem [shape: bf16[32,16], index: 3, kind: input, shape index: {}]
  %s4 = inlined_call_operand.vmem [shape: bf16[16,16], index: 4, kind: input, shape index: {}]
  %s5 = inlined_call_operand.vmem [shape: bf16[8,16], index: 5, kind: input, shape index: {}]
  %s6 = inlined_call_operand.vmem [shape: bf16[16,32], index: 6, kind: input, shape index: {}]
  %s7 = inlined_call_operand.vmem [shape: bf16[32,48], index: 7, kind: input, shape index: {}]
  %s8 = inlined_call_operand.vmem [shape: f32[1,160], index: 8, kind: input, shape index: {}]
  %s9 = inlined_call_operand.hbm [shape: f32[8,128], index: 9, kind: output, shape index: {}]
  %s10 = sld [smem:[#allocation0]]
  $region46: #{tpu_custom_call.1} parent=0
    _
  %s12 = ssub.s32 1, %s10
  %s13 = scalar_select 0, %s12, %s10
  $region1: #{tpu_custom_call.1} parent=0
    #allocation2 [shape = 'u8[4096]{0}', space=vmem, size = 0x1000, scoped, tag = 'output window, operand 0, single buffered']
    #allocation3 [shape = 's32[1]{0}', space=sflag, size = 0x4, scoped, tag = 'scoped memory for tpu_custom_call.1']
    %14 = vsyncpa [#allocation3], 0
    // Predicated region
    $region2: #{tpu_custom_call.1} parent=1 // pred_check
      _
    $region3: #{tpu_custom_call.1} parent=1 // pred_check_branch
      %16 = sbr.rel (0) target = $region5
    $region4: #{tpu_custom_call.1} parent=1 // pred_region
      _
    $region5: #{tpu_custom_call.1} parent=1 // pred_fallthru
      _
    // Predicated region
    $region6: #{tpu_custom_call.1} parent=1 // pred_check
      _
    $region7: #{tpu_custom_call.1} parent=1 // pred_check_branch
      %18 = sbr.rel (0) target = $region9
    $region8: #{tpu_custom_call.1} parent=1 // pred_region
      _
    $region9: #{tpu_custom_call.1} parent=1 // pred_fallthru
      _
    // Predicated region
    $region10: #{tpu_custom_call.1} parent=1 // pred_check
      _
    $region11: #{tpu_custom_call.1} parent=1 // pred_check_branch
      %20 = sbr.rel (0) target = $region13
    $region12: #{tpu_custom_call.1} parent=1 // pred_region
      _
    $region13: #{tpu_custom_call.1} parent=1 // pred_fallthru
      _
    // Predicated region
    $region14: #{tpu_custom_call.1} parent=1 // pred_check
      _
    $region15: #{tpu_custom_call.1} parent=1 // pred_check_branch
      %22 = sbr.rel (0) target = $region17
    $region16: #{tpu_custom_call.1} parent=1 // pred_region
      _
    $region17: #{tpu_custom_call.1} parent=1 // pred_fallthru
      _
    // Predicated region
    $region18: #{tpu_custom_call.1} parent=1 // pred_check
      _
    $region19: #{tpu_custom_call.1} parent=1 // pred_check_branch
      %24 = sbr.rel (0) target = $region21
    $region20: #{tpu_custom_call.1} parent=1 // pred_region
      _
    $region21: #{tpu_custom_call.1} parent=1 // pred_fallthru
      _
    // Predicated region
    $region22: #{tpu_custom_call.1} parent=1 // pred_check
      _
    $region23: #{tpu_custom_call.1} parent=1 // pred_check_branch
      %26 = sbr.rel (0) target = $region25
    $region24: #{tpu_custom_call.1} parent=1 // pred_region
      _
    $region25: #{tpu_custom_call.1} parent=1 // pred_fallthru
      _
    // Predicated region
    $region26: #{tpu_custom_call.1} parent=1 // pred_check
      _
    $region27: #{tpu_custom_call.1} parent=1 // pred_check_branch
      %28 = sbr.rel (0) target = $region29
    $region28: #{tpu_custom_call.1} parent=1 // pred_region
      _
    $region29: #{tpu_custom_call.1} parent=1 // pred_fallthru
      _
    // Predicated region
    $region30: #{tpu_custom_call.1} parent=1 // pred_check
      _
    $region31: #{tpu_custom_call.1} parent=1 // pred_check_branch
      %30 = sbr.rel (0) target = $region33
    $region32: #{tpu_custom_call.1} parent=1 // pred_region
      _
    $region33: #{tpu_custom_call.1} parent=1 // pred_fallthru
      _
    // Predicated region
    $region34: #{tpu_custom_call.1} parent=1 // pred_check
      _
    $region35: #{tpu_custom_call.1} parent=1 // pred_check_branch
      %32 = sbr.rel (0) target = $region37
    $region36: #{tpu_custom_call.1} parent=1 // pred_region
      _
    $region37: #{tpu_custom_call.1} parent=1 // pred_fallthru
      _
    %v34 = vld [vmem:[%s8] sm:$0x3]
    %v35 = vld [vmem:[%s0] sm:$0xff]
    %v36 = vpack.c.bf16 %v35, %v35
    %v37 = vld [vmem:[%s2] sm:$0xf]
    %v38 = vld [vmem:[%s2 + $0x4] sm:$0xf]
    %v39 = vld [vmem:[%s2 + $0x8] sm:$0xf]
    %v40 = vld [vmem:[%s2 + $0xc] sm:$0xf]
    %v41 = vld [vmem:[%s2 + $0x10] sm:$0xf]
    %v42 = vld [vmem:[%s2 + $0x14] sm:$0xf]
    %v44 = vlaneseq
    %v45 = vshrl.u32 %v44, 7
    %v46 = vsub.s32 0, %v45
    %v47 = vrot.slane %v34, %v46
    %v55 = vunpack.c.l.b16 %v37
    %v56 = vunpack.c.l.b16 %v38
    %v57 = vunpack.c.l.b16 %v39
    %v58 = vunpack.c.l.b16 %v40
    %v59 = vunpack.c.l.b16 %v41
    %v60 = vunpack.c.l.b16 %v42
    %v61 = vpack.c.b16 %v56, %v55
    %v62 = vpack.c.b16 %v58, %v57
    %v63 = vpack.c.b16 %v60, %v59
    %vm67 = vcmask 392192
    %v69 = vsel %vm67, %v36, 0
    %71 = vmatprep.subr.bf16.mxu0 0
    %72 = vmatpush1.bf16.msra.mxu0 0
    %73 = vmatprep.subr.bf16.mxu0 0
    %74 = vmatpush1.bf16.msra.mxu0 0
    %75 = vmatprep.subr.bf16.mxu0 0
    %76 = vmatpush1.bf16.msra.mxu0 0
    %77 = vmatprep.subr.bf16.mxu0 0
    %78 = vmatpush1.bf16.msra.mxu0 0
    %79 = vmatprep.subr.bf16.mxu0 0
    %80 = vmatpush1.bf16.msra.mxu0 0
    %81 = vmatprep.subr.bf16.mxu0 0
    %82 = vmatpush1.bf16.msra.mxu0 %v63
    %83 = vmatprep.subr.bf16.mxu0 0
    %84 = vmatpush1.bf16.msra.mxu0 %v62
    %85 = vmatprep.subr.bf16.mxu0 0
    %86 = vmatpush1.bf16.msra.mxu0 %v61
    %87 = vmatprep.subr.bf16.mxu0 0
    %88 = vmatpush2.bf16.msra.mxu0 0
    %89 = vmatprep.subr.bf16.mxu0 0
    %90 = vmatpush2.bf16.msra.mxu0 0
    %91 = vmatprep.subr.bf16.mxu0 0
    %92 = vmatpush2.bf16.msra.mxu0 0
    %93 = vmatprep.subr.bf16.mxu0 0
    %94 = vmatpush2.bf16.msra.mxu0 0
    %95 = vmatprep.subr.bf16.mxu0 0
    %96 = vmatpush2.bf16.msra.mxu0 0
    %97 = vmatprep.subr.bf16.mxu0 0
    %98 = vmatpush2.bf16.msra.mxu0 0
    %99 = vmatprep.subr.bf16.mxu0 0
    %100 = vmatpush2.bf16.msra.mxu0 0
    %101 = vmatprep.subr.bf16.mxu0 0
    %102 = vmatpush2.bf16.msra.mxu0 0
    %103 = vmatprep.mubr.bf16.mxu0 0
    %104 = vmatmul.mubr.bf16.gmra.mxu0 %v69
    %v105 = vpop.f32.mrf.mxu0
    %v106 = vadd.f32 %v47, %v105
    %v107 = vpop.f32.mrf.mxu0
    %v108 = vpop.f32.mrf.mxu0
    %v109 = vpop.f32.mrf.mxu0
    %110 = vdwg.mxu0
    %v111 = vmax.f32 %v106, 0.0
    %v112 = vpack.c.bf16 %v111, %v111
    %v113 = vld [vmem:[%s3] sm:$0xf]
    %v114 = vld [vmem:[%s3 + $0x4] sm:$0xf]
    %v115 = vld [vmem:[%s3 + $0x8] sm:$0xf]
    %v116 = vld [vmem:[%s3 + $0xc] sm:$0xf]
    %v121 = vunpack.c.l.b16 %v113
    %v122 = vunpack.c.l.b16 %v114
    %v123 = vunpack.c.l.b16 %v115
    %v124 = vunpack.c.l.b16 %v116
    %v125 = vpack.c.b16 %v122, %v121
    %v126 = vpack.c.b16 %v124, %v123
    %129 = vrot.lane.b32.xlu0 %v47, 96
    %v130 = vpop.permute.xlu0 %129
    %vm132 = vcmask 261120
    %v134 = vsel %vm132, %v112, 0
    %136 = vmatprep.subr.bf16.mxu0 0
    %137 = vmatpush1.bf16.msra.mxu0 0
    %138 = vmatprep.subr.bf16.mxu0 0
    %139 = vmatpush1.bf16.msra.mxu0 0
    %140 = vmatprep.subr.bf16.mxu0 0
    %141 = vmatpush1.bf16.msra.mxu0 0
    %142 = vmatprep.subr.bf16.mxu0 0
    %143 = vmatpush1.bf16.msra.mxu0 0
    %144 = vmatprep.subr.bf16.mxu0 0
    %145 = vmatpush1.bf16.msra.mxu0 0
    %146 = vmatprep.subr.bf16.mxu0 0
    %147 = vmatpush1.bf16.msra.mxu0 0
    %148 = vmatprep.subr.bf16.mxu0 0
    %149 = vmatpush1.bf16.msra.mxu0 %v126
    %150 = vmatprep.subr.bf16.mxu0 0
    %151 = vmatpush1.bf16.msra.mxu0 %v125
    %152 = vmatprep.subr.bf16.mxu0 0
    %153 = vmatpush2.bf16.msra.mxu0 0
    %154 = vmatprep.subr.bf16.mxu0 0
    %155 = vmatpush2.bf16.msra.mxu0 0
    %156 = vmatprep.subr.bf16.mxu0 0
    %157 = vmatpush2.bf16.msra.mxu0 0
    %158 = vmatprep.subr.bf16.mxu0 0
    %159 = vmatpush2.bf16.msra.mxu0 0
    %160 = vmatprep.subr.bf16.mxu0 0
    %161 = vmatpush2.bf16.msra.mxu0 0
    %162 = vmatprep.subr.bf16.mxu0 0
    %163 = vmatpush2.bf16.msra.mxu0 0
    %164 = vmatprep.subr.bf16.mxu0 0
    %165 = vmatpush2.bf16.msra.mxu0 0
    %166 = vmatprep.subr.bf16.mxu0 0
    %167 = vmatpush2.bf16.msra.mxu0 0
    %168 = vmatprep.mubr.bf16.mxu0 0
    %169 = vmatmul.mubr.bf16.gmra.mxu0 %v134
    %v170 = vpop.f32.mrf.mxu0
    %v171 = vadd.f32 %v130, %v170
    %v172 = vpop.f32.mrf.mxu0
    %v173 = vpop.f32.mrf.mxu0
    %v174 = vpop.f32.mrf.mxu0
    %175 = vdwg.mxu0
    %v176 = vpack.c.bf16 %v171, %v171
    %v177 = vld [vmem:[%s4] sm:$0xf]
    %v178 = vld [vmem:[%s4 + $0x4] sm:$0xf]
    %v181 = vunpack.c.l.b16 %v177
    %v182 = vunpack.c.l.b16 %v178
    %v183 = vpack.c.b16 %v182, %v181
    %185 = vrot.lane.b32.xlu0 %v47, 80
    %v186 = vpop.permute.xlu0 %185
    %vm188 = vcmask 130048
    %v190 = vsel %vm188, %v176, 0
    %192 = vmatprep.subr.bf16.mxu0 0
    %193 = vmatpush1.bf16.msra.mxu0 0
    %194 = vmatprep.subr.bf16.mxu0 0
    %195 = vmatpush1.bf16.msra.mxu0 0
    %196 = vmatprep.subr.bf16.mxu0 0
    %197 = vmatpush1.bf16.msra.mxu0 0
    %198 = vmatprep.subr.bf16.mxu0 0
    %199 = vmatpush1.bf16.msra.mxu0 0
    %200 = vmatprep.subr.bf16.mxu0 0
    %201 = vmatpush1.bf16.msra.mxu0 0
    %202 = vmatprep.subr.bf16.mxu0 0
    %203 = vmatpush1.bf16.msra.mxu0 0
    %204 = vmatprep.subr.bf16.mxu0 0
    %205 = vmatpush1.bf16.msra.mxu0 0
    %206 = vmatprep.subr.bf16.mxu0 0
    %207 = vmatpush1.bf16.msra.mxu0 %v183
    %208 = vmatprep.subr.bf16.mxu0 0
    %209 = vmatpush2.bf16.msra.mxu0 0
    %210 = vmatprep.subr.bf16.mxu0 0
    %211 = vmatpush2.bf16.msra.mxu0 0
    %212 = vmatprep.subr.bf16.mxu0 0
    %213 = vmatpush2.bf16.msra.mxu0 0
    %214 = vmatprep.subr.bf16.mxu0 0
    %215 = vmatpush2.bf16.msra.mxu0 0
    %216 = vmatprep.subr.bf16.mxu0 0
    %217 = vmatpush2.bf16.msra.mxu0 0
    %218 = vmatprep.subr.bf16.mxu0 0
    %219 = vmatpush2.bf16.msra.mxu0 0
    %220 = vmatprep.subr.bf16.mxu0 0
    %221 = vmatpush2.bf16.msra.mxu0 0
    %222 = vmatprep.subr.bf16.mxu0 0
    %223 = vmatpush2.bf16.msra.mxu0 0
    %224 = vmatprep.mubr.bf16.mxu0 0
    %225 = vmatmul.mubr.bf16.gmra.mxu0 %v190
    %v226 = vpop.f32.mrf.mxu0
    %v227 = vadd.f32 %v186, %v226
    %v228 = vpop.f32.mrf.mxu0
    %v229 = vpop.f32.mrf.mxu0
    %v230 = vpop.f32.mrf.mxu0
    %231 = vdwg.mxu0
    %v232 = vmul.f32 %v227, 0.5
    %v233 = vmul.f32 %v232, 1.442695
    %v234 = vpow.pop %v233
    %v235 = vld [vmem:[%s1] sm:$0xff]
    %237 = vrot.lane.b32.xlu0 %v234, 120
    %v238 = vpop.permute.xlu0 %237
    %v240 = vmul.f32 %v235, %v238
    %v241 = vadd.f32 %v227, %v240
    %v242 = vpack.c.bf16 %v241, %v241
    %v243 = vld [vmem:[%s5] sm:$0xf]
    %244 = vrot.lane.b32.xlu0 %v47, 64
    %v245 = vpop.permute.xlu0 %244
    %vm247 = vcmask 64512
    %v249 = vsel %vm247, %v242, 0
    %vm251 = vcmask 1043456
    %v253 = vsel %vm251, %v243, 0
    %255 = vmatprep.subr.bf16.mxu0 0
    %256 = vmatpush1.bf16.msra.mxu0 0
    %257 = vmatprep.subr.bf16.mxu0 0
    %258 = vmatpush1.bf16.msra.mxu0 0
    %259 = vmatprep.subr.bf16.mxu0 0
    %260 = vmatpush1.bf16.msra.mxu0 0
    %261 = vmatprep.subr.bf16.mxu0 0
    %262 = vmatpush1.bf16.msra.mxu0 0
    %263 = vmatprep.subr.bf16.mxu0 0
    %264 = vmatpush1.bf16.msra.mxu0 0
    %265 = vmatprep.subr.bf16.mxu0 0
    %266 = vmatpush1.bf16.msra.mxu0 0
    %267 = vmatprep.subr.bf16.mxu0 0
    %268 = vmatpush1.bf16.msra.mxu0 0
    %269 = vmatprep.subr.bf16.mxu0 0
    %270 = vmatpush1.bf16.msra.mxu0 %v253
    %271 = vmatprep.subr.bf16.mxu0 0
    %272 = vmatpush2.bf16.msra.mxu0 0
    %273 = vmatprep.subr.bf16.mxu0 0
    %274 = vmatpush2.bf16.msra.mxu0 0
    %275 = vmatprep.subr.bf16.mxu0 0
    %276 = vmatpush2.bf16.msra.mxu0 0
    %277 = vmatprep.subr.bf16.mxu0 0
    %278 = vmatpush2.bf16.msra.mxu0 0
    %279 = vmatprep.subr.bf16.mxu0 0
    %280 = vmatpush2.bf16.msra.mxu0 0
    %281 = vmatprep.subr.bf16.mxu0 0
    %282 = vmatpush2.bf16.msra.mxu0 0
    %283 = vmatprep.subr.bf16.mxu0 0
    %284 = vmatpush2.bf16.msra.mxu0 0
    %285 = vmatprep.subr.bf16.mxu0 0
    %286 = vmatpush2.bf16.msra.mxu0 0
    %287 = vmatprep.mubr.bf16.mxu0 0
    %288 = vmatmul.mubr.bf16.gmra.mxu0 %v249
    %v289 = vpop.f32.mrf.mxu0
    %v290 = vadd.f32 %v245, %v289
    %v291 = vpop.f32.mrf.mxu0
    %v292 = vpop.f32.mrf.mxu0
    %v293 = vpop.f32.mrf.mxu0
    %294 = vdwg.mxu0
    %v295 = vmax.f32 %v290, 0.0
    %v296 = vpack.c.bf16 %v295, %v295
    %v297 = vld [vmem:[%s6] sm:$0xf]
    %v298 = vld [vmem:[%s6 + $0x4] sm:$0xf]
    %v301 = vunpack.c.l.b16 %v297
    %v302 = vunpack.c.l.b16 %v298
    %v303 = vpack.c.b16 %v302, %v301
    %305 = vrot.lane.b32.xlu0 %v47, 48
    %v306 = vpop.permute.xlu0 %305
    %v309 = vsel %vm188, %v296, 0
    %311 = vmatprep.subr.bf16.mxu0 0
    %312 = vmatpush1.bf16.msra.mxu0 0
    %313 = vmatprep.subr.bf16.mxu0 0
    %314 = vmatpush1.bf16.msra.mxu0 0
    %315 = vmatprep.subr.bf16.mxu0 0
    %316 = vmatpush1.bf16.msra.mxu0 0
    %317 = vmatprep.subr.bf16.mxu0 0
    %318 = vmatpush1.bf16.msra.mxu0 0
    %319 = vmatprep.subr.bf16.mxu0 0
    %320 = vmatpush1.bf16.msra.mxu0 0
    %321 = vmatprep.subr.bf16.mxu0 0
    %322 = vmatpush1.bf16.msra.mxu0 0
    %323 = vmatprep.subr.bf16.mxu0 0
    %324 = vmatpush1.bf16.msra.mxu0 0
    %325 = vmatprep.subr.bf16.mxu0 0
    %326 = vmatpush1.bf16.msra.mxu0 %v303
    %327 = vmatprep.subr.bf16.mxu0 0
    %328 = vmatpush2.bf16.msra.mxu0 0
    %329 = vmatprep.subr.bf16.mxu0 0
    %330 = vmatpush2.bf16.msra.mxu0 0
    %331 = vmatprep.subr.bf16.mxu0 0
    %332 = vmatpush2.bf16.msra.mxu0 0
    %333 = vmatprep.subr.bf16.mxu0 0
    %334 = vmatpush2.bf16.msra.mxu0 0
    %335 = vmatprep.subr.bf16.mxu0 0
    %336 = vmatpush2.bf16.msra.mxu0 0
    %337 = vmatprep.subr.bf16.mxu0 0
    %338 = vmatpush2.bf16.msra.mxu0 0
    %339 = vmatprep.subr.bf16.mxu0 0
    %340 = vmatpush2.bf16.msra.mxu0 0
    %341 = vmatprep.subr.bf16.mxu0 0
    %342 = vmatpush2.bf16.msra.mxu0 0
    %343 = vmatprep.mubr.bf16.mxu0 0
    %344 = vmatmul.mubr.bf16.gmra.mxu0 %v309
    %v345 = vpop.f32.mrf.mxu0
    %v346 = vadd.f32 %v306, %v345
    %v347 = vpop.f32.mrf.mxu0
    %v348 = vpop.f32.mrf.mxu0
    %v349 = vpop.f32.mrf.mxu0
    %350 = vdwg.mxu0
    %v351 = vmax.f32 %v346, 0.0
    %v352 = vpack.c.bf16 %v351, %v351
    %v353 = vld [vmem:[%s7] sm:$0xf]
    %v354 = vld [vmem:[%s7 + $0x4] sm:$0xf]
    %v355 = vld [vmem:[%s7 + $0x8] sm:$0xf]
    %v356 = vld [vmem:[%s7 + $0xc] sm:$0xf]
    %v357 = vlaneseq
    %v358 = vshrl.u32 %v357, 7
    %v359 = vsub.s32 1, %v358
    %v360 = vrot.slane %v34, %v359
    %v365 = vunpack.c.l.b16 %v353
    %v366 = vunpack.c.l.b16 %v354
    %v367 = vunpack.c.l.b16 %v355
    %v368 = vunpack.c.l.b16 %v356
    %v369 = vpack.c.b16 %v366, %v365
    %v370 = vpack.c.b16 %v368, %v367
    %373 = vrot.lane.b32.xlu0 %v47, 16
    %v374 = vpop.permute.xlu0 %373
    %375 = vrot.lane.b32.xlu0 %v360, 16
    %v376 = vpop.permute.xlu0 %375
    %v377 = vsel %vm188, %v374, %v376
    %v380 = vsel %vm132, %v352, 0
    %382 = vmatprep.subr.bf16.mxu0 0
    %383 = vmatpush1.bf16.msra.mxu0 0
    %384 = vmatprep.subr.bf16.mxu0 0
    %385 = vmatpush1.bf16.msra.mxu0 0
    %386 = vmatprep.subr.bf16.mxu0 0
    %387 = vmatpush1.bf16.msra.mxu0 0
    %388 = vmatprep.subr.bf16.mxu0 0
    %389 = vmatpush1.bf16.msra.mxu0 0
    %390 = vmatprep.subr.bf16.mxu0 0
    %391 = vmatpush1.bf16.msra.mxu0 0
    %392 = vmatprep.subr.bf16.mxu0 0
    %393 = vmatpush1.bf16.msra.mxu0 0
    %394 = vmatprep.subr.bf16.mxu0 0
    %395 = vmatpush1.bf16.msra.mxu0 %v370
    %396 = vmatprep.subr.bf16.mxu0 0
    %397 = vmatpush1.bf16.msra.mxu0 %v369
    %398 = vmatprep.subr.bf16.mxu0 0
    %399 = vmatpush2.bf16.msra.mxu0 0
    %400 = vmatprep.subr.bf16.mxu0 0
    %401 = vmatpush2.bf16.msra.mxu0 0
    %402 = vmatprep.subr.bf16.mxu0 0
    %403 = vmatpush2.bf16.msra.mxu0 0
    %404 = vmatprep.subr.bf16.mxu0 0
    %405 = vmatpush2.bf16.msra.mxu0 0
    %406 = vmatprep.subr.bf16.mxu0 0
    %407 = vmatpush2.bf16.msra.mxu0 0
    %408 = vmatprep.subr.bf16.mxu0 0
    %409 = vmatpush2.bf16.msra.mxu0 0
    %410 = vmatprep.subr.bf16.mxu0 0
    %411 = vmatpush2.bf16.msra.mxu0 0
    %412 = vmatprep.subr.bf16.mxu0 0
    %413 = vmatpush2.bf16.msra.mxu0 0
    %414 = vmatprep.mubr.bf16.mxu0 0
    %415 = vmatmul.mubr.bf16.gmra.mxu0 %v380
    %v416 = vpop.f32.mrf.mxu0
    %v417 = vadd.f32 %v377, %v416
    %v418 = vpop.f32.mrf.mxu0
    %v419 = vpop.f32.mrf.mxu0
    %v420 = vpop.f32.mrf.mxu0
    %421 = vdwg.mxu0
    %423 = vrot.lane.b32.xlu0 %v241, 48
    %v424 = vpop.permute.xlu0 %423
    %427 = vrot.lane.b32.xlu0 %v227, 56
    %v428 = vpop.permute.xlu0 %427
    %v430 = vsel %vm67, %v417, %v424
    %vm431 = vcmask 457728
    %v432 = vsel %vm431, %v430, %v428
    %vm433 = vcmask 523264
    %v434 = vsel %vm433, %v432, %v428
    %vm435 = vcmask 588800
    %v436 = vsel %vm435, %v434, 0.0
    %437 = vst [vmem:[#allocation2] sm:$0xff] %v436
    // Predicated region
    $region38: #{tpu_custom_call.1} parent=1 // pred_check
      _
    $region39: #{tpu_custom_call.1} parent=1 // pred_check_branch
      %439 = sbr.rel (0) target = $region41
    $region40: #{tpu_custom_call.1} parent=1 // pred_region
      %s441 = ssub.s32 128, 128
      %442 = vsyncadd [#allocation3], %s441
      %s444 = sshll.u32 [#allocation2], 4
      %s445 = int_to_ptr.vmem [resolvable:$true] %s444
      %447 = dma.vmem_to_hbm [thread:$0]  %s445, 128, %s9, [#allocation3]
    $region41: #{tpu_custom_call.1} parent=1 // pred_fallthru
      _
    // Predicated region
    $region42: #{tpu_custom_call.1} parent=1 // pred_check
      _
    $region43: #{tpu_custom_call.1} parent=1 // pred_check_branch
      %449 = sbr.rel (0) target = $region45
    $region44: #{tpu_custom_call.1} parent=1 // pred_region
      %450 = dma.done [#allocation3], 128
    $region45: #{tpu_custom_call.1} parent=1 // pred_fallthru
      _
    %451 = vsyncpa [#allocation3], 1

</llo_original>
